<compile_context>
chip_gen: v5e
topology: v5e:2x2
jax: 0.10.0
libtpu: 0.0.40
codegen_flags: <defaults>
</compile_context>

<pallas_src>
import functools

import jax
import jax.numpy as jnp
from jax.experimental import pallas as pl
from jax.experimental.pallas import tpu as pltpu


_LANE = 128          # vreg lane width
_ROW_ALIGN = 32      # sublane multiple legal for f32 / bf16 / int8 packing
# Per-block byte budget.  In the lane-tiled path input and output blocks have
# the same shape, so the double-buffered pipeline footprint is
#   2 * (in_block + out_block) ≈ 4 * _BLOCK_BUDGET_BYTES = 8 MiB,
# under every generation's scoped-VMEM default.  1-2 MiB blocks are the
# measured sweet spot for memory-bound copies (85-86% of HBM roofline).
_BLOCK_BUDGET_BYTES = 2 * 1024 * 1024
# Below this output size, XLA's fused slice already hits roofline and a
# pallas_call only adds custom-call dispatch + pipeline prologue/epilogue.
_XLA_BYPASS_BYTES = 1 * 1024 * 1024


def _chomp_kernel(x_ref, o_ref):
    # Lane-tiled path: input/output blocks have identical shapes → plain copy.
    # Short-sequence path: input block is (tr, L), output block is (tr, L_out)
    # → static leading slice.  Either way a single lane-dense store.
    o_ref[...] = x_ref[:, : o_ref.shape[-1]]


def _round_down(x, m):
    return (x // m) * m


def _round_up(x, m):
    return ((x + m - 1) // m) * m


def _lane_tiles(rows, l_out, itemsize):
    """(tr, tl) for the lane-tiled copy path (l_out >= 128)."""
    budget_elems = max(_BLOCK_BUDGET_BYTES // itemsize, _ROW_ALIGN * _LANE)
    # Widest lane-dense tile that still leaves room for >= _ROW_ALIGN rows.
    tl_cap = max(_LANE, _round_down(budget_elems // _ROW_ALIGN, _LANE))
    tl = min(_round_down(l_out, _LANE), tl_cap)
    # Spend the rest of the budget on rows (sublane-aligned).
    tr = max(_ROW_ALIGN, _round_down(budget_elems // tl, _ROW_ALIGN))
    if rows <= tr:
        tr = rows                    # full extent: always a legal block dim
    return tr, tl


def _short_tiles(rows, l, l_out, itemsize):
    """tr for the short-sequence path (l_out < 128, lane dim at full extent)."""
    per_row = l + l_out              # one input row + one output row per block row
    budget_elems = max(_BLOCK_BUDGET_BYTES // itemsize, _ROW_ALIGN * per_row)
    tr = max(_ROW_ALIGN, _round_down(budget_elems // per_row, _ROW_ALIGN))
    if rows <= tr:
        tr = rows
    return tr


@functools.partial(jax.jit, static_argnames=("chomp_size", "force_pallas"))
def chomp1d(x, chomp_size, *, force_pallas=False):
    """Pallas TPU equivalent of Chomp1d: x[:, :, :-chomp_size].contiguous()."""
    if chomp_size < 0:
        raise ValueError("chomp_size must be non-negative.")
    B, C, L = x.shape
    if chomp_size == 0 or chomp_size >= L:
        # Matches PyTorch: x[:, :, :-0] is empty; chomp >= L also clamps empty.
        return x[:, :, :0]
    L_out = L - chomp_size

    rows = B * C
    itemsize = jnp.dtype(x.dtype).itemsize
    out_bytes = rows * L_out * itemsize
    if not force_pallas and out_bytes <= _XLA_BYPASS_BYTES:
        # Launch-latency-bound regime; let XLA do the slice.
        return x[:, :, :L_out]

    x2 = x.reshape(rows, L)          # free reshape, no data movement

    if L_out >= _LANE:
        # Lane-tiled pure copy: 128-multiple blocks keep stores lane-dense and
        # the input blocks never touch most of the chomped tail.
        tr, tl = _lane_tiles(rows, L_out, itemsize)
        grid_r, grid_l = pl.cdiv(rows, tr), pl.cdiv(L_out, tl)
        # v7x megacore: ensure >= 2 blocks along a "parallel" axis so the copy
        # is not serialized onto a single TensorCore.
        if grid_r * grid_l == 1:
            if rows > _ROW_ALIGN:
                tr = min(_round_up(-(-rows // 2), _ROW_ALIGN),
                         _round_down(rows, _ROW_ALIGN))
                grid_r = pl.cdiv(rows, tr)
            elif tl > _LANE:
                tl = max(_LANE, _round_up(-(-tl // 2), _LANE))
                grid_l = pl.cdiv(L_out, tl)
        in_block, out_block = (tr, tl), (tr, tl)
        grid = (grid_r, grid_l)
        in_map = lambda i, j: (i, j)
        out_map = lambda i, j: (i, j)
    else:
        # Short sequences: lane dim stays at full extent (always legal);
        # the kernel does a static in-kernel slice.
        tr = _short_tiles(rows, L, L_out, itemsize)
        if rows > _ROW_ALIGN and pl.cdiv(rows, tr) == 1:
            tr = min(_round_up(-(-rows // 2), _ROW_ALIGN),
                     _round_down(rows, _ROW_ALIGN))
        in_block, out_block = (tr, L), (tr, L_out)
        grid = (pl.cdiv(rows, tr), 1)
        in_map = lambda i, j: (i, 0)
        out_map = lambda i, j: (i, 0)

    out2 = pl.pallas_call(
        _chomp_kernel,
        out_shape=jax.ShapeDtypeStruct((rows, L_out), x.dtype),
        grid=grid,
        in_specs=[pl.BlockSpec(in_block, in_map)],
        out_specs=pl.BlockSpec(out_block, out_map),
        compiler_params=pltpu.CompilerParams(
            dimension_semantics=("parallel", "parallel")),
    )(x2)
    return out2.reshape(B, C, L_out)


if __name__ == "__main__":
    key = jax.random.PRNGKey(0)
    k1, k2, k3, k4, k5 = jax.random.split(key, 5)

    # Case 1: canonical small TCN-style input (B, C, L) = (2, 4, 16), chomp=2
    # (short-sequence path, full-extent blocks).
    x1 = jax.random.normal(k1, (2, 4, 16), jnp.float32)
    y1 = jax.block_until_ready(chomp1d(x1, 2, force_pallas=True))
    assert y1.shape == (2, 4, 14) and y1.dtype == jnp.float32
    assert bool(jnp.array_equal(y1, x1[:, :, :-2]))

    # Case 2: lane-tiled path with a partial edge lane block, bf16 input.
    x2 = jax.random.normal(k2, (3, 5, 333), jnp.float32).astype(jnp.bfloat16)
    y2 = jax.block_until_ready(chomp1d(x2, 5, force_pallas=True))
    assert y2.shape == (3, 5, 328) and y2.dtype == jnp.bfloat16
    assert bool(jnp.array_equal(y2.astype(jnp.float32),
                                x2[:, :, :-5].astype(jnp.float32)))

    # Case 3: short-sequence path with row split (B*C = 600 rows → 2 row blocks).
    x3 = jax.random.normal(k3, (2, 300, 40), jnp.float32)
    y3 = jax.block_until_ready(chomp1d(x3, 3, force_pallas=True))
    assert y3.shape == (2, 300, 37) and y3.dtype == jnp.float32
    assert bool(jnp.array_equal(y3, x3[:, :, :-3]))

    # Case 4: edge-block lock-in from the review — L_out=129, chomp=1, tl=128:
    # the second input lane block extends past L; output is masked at 129.
    x4 = jax.random.normal(k4, (4, 8, 130), jnp.float32)
    y4 = jax.block_until_ready(chomp1d(x4, 1, force_pallas=True))
    assert y4.shape == (4, 8, 129)
    assert bool(jnp.array_equal(y4, x4[:, :, :-1]))

    # Case 5: moderate shape above the XLA-bypass threshold — exercises the
    # wide (budget-derived tl > 512) lane-tiled path and the v7x row split.
    x5 = jax.random.normal(k5, (4, 64, 2048), jnp.float32)
    y5 = jax.block_until_ready(chomp1d(x5, 128))
    assert y5.shape == (4, 64, 1920)
    assert bool(jnp.array_equal(y5, x5[:, :, :-128]))

    # Case 6: chomp_size == 0 reproduces PyTorch's empty x[:, :, :-0].
    y0 = jax.block_until_ready(chomp1d(x1, 0))
    assert y0.shape == (2, 4, 0)

    print("KERNEL_OK")
</pallas_src>

<mosaic_0001>
module attributes {stable_mosaic.version = 11 : i64} {
  func.func @_chomp_kernel(%arg0: i32, %arg1: i32, %arg2: memref<8x16xf32, #tpu.memory_space<vmem>>, %arg3: memref<8x14xf32, #tpu.memory_space<vmem>>) attributes {dimension_semantics = [#tpu.dimension_semantics<parallel>, #tpu.dimension_semantics<parallel>], iteration_bounds = array<i64: 1, 1>, scalar_prefetch = 0 : i64, scratch_operands = 0 : i64, tpu.core_type = #tpu.core_type<tc>, window_params = [{transform_indices = @transform_0, window_bounds = array<i64: 8, 16>}, {transform_indices = @transform_1, window_bounds = array<i64: 8, 14>}]} {
    %c0 = arith.constant 0 : index
    %c0_0 = arith.constant 0 : index
    %0 = vector.load %arg2[%c0, %c0_0] : memref<8x16xf32, #tpu.memory_space<vmem>>, vector<8x14xf32>
    %c0_1 = arith.constant 0 : index
    %c0_2 = arith.constant 0 : index
    %1 = vector.load %arg3[%c0_1, %c0_2] : memref<8x14xf32, #tpu.memory_space<vmem>>, vector<8x14xf32>
    tpu.vector_store %arg3[%c0_1, %c0_2], %0 {strides = array<i32>} : memref<8x14xf32, #tpu.memory_space<vmem>>, vector<8x14xf32>,
    return
  }
  func.func @transform_0(%arg0: i32, %arg1: i32) -> (i32, i32) {
    %c0_i32 = arith.constant 0 : i32
    %c0_i32_0 = arith.constant 0 : i32
    return %arg0, %c0_i32 : i32, i32
  }
  func.func @transform_1(%arg0: i32, %arg1: i32) -> (i32, i32) {
    %c0_i32 = arith.constant 0 : i32
    %c0_i32_0 = arith.constant 0 : i32
    return %arg0, %c0_i32 : i32, i32
  }
}

</mosaic_0001>

<llo_original>
// kernel: chomp1d.1
$region0: #{chomp1d.1}
  #allocation0 [shape = 'u32[]', space=smem, size = 0x4, offset = 0x4, fixed_abs, tag = 'smem constant byte address 0x4 - core index']
  #allocation1 [shape = 'u32[72,128]{1,0:T(1,128)}', space=vmem, size = 0x9000, scoped, tag = 'internal scratch']
  %s0 = inlined_call_operand.hbm [shape: f32[8,16], index: 0, kind: input, shape index: {}]
  %s1 = inlined_call_operand.hbm [shape: f32[8,14], index: 1, kind: output, shape index: {}]
  %s2 = sld [smem:[#allocation0]]
  $region18: #{chomp1d.1} parent=0
    _
  %s4 = ssub.s32 1, %s2
  %s5 = scalar_select 0, %s4, %s2
  $region1: #{chomp1d.1} parent=0
    #allocation2 [shape = 'u8[4096]{0}', space=vmem, size = 0x1000, scoped, tag = 'input window, operand 0, single buffered']
    #allocation3 [shape = 's32[1]{0}', space=sflag, size = 0x4, scoped, tag = 'scoped memory for chomp1d.1']
    #allocation4 [shape = 's32[1]{0}', space=sflag, size = 0x4, scoped, tag = 'scoped memory for chomp1d.1']
    #allocation5 [shape = 'u8[4096]{0}', space=vmem, size = 0x1000, scoped, tag = 'output window, operand 0, single buffered']
    %6 = vsyncpa [#allocation3], 0
    %7 = vsyncpa [#allocation4], 0
    // Predicated region
    $region2: #{chomp1d.1} parent=1 // pred_check
      _
    $region3: #{chomp1d.1} parent=1 // pred_check_branch
      %9 = sbr.rel (0) target = $region5
    $region4: #{chomp1d.1} parent=1 // pred_region
      %11 = vsyncadd [#allocation3], 0
      %s13 = sshll.u32 %s0, 4
      %s14 = int_to_ptr.hbm [resolvable:$true] %s13
      %s15 = sshll.u32 [#allocation2], 4
      %s16 = int_to_ptr.vmem [resolvable:$true] %s15
      %18 = dma.hbm_to_vmem [thread:$0]  %s14, 128, %s16, [#allocation3]
    $region5: #{chomp1d.1} parent=1 // pred_fallthru
      _
    // Predicated region
    $region6: #{chomp1d.1} parent=1 // pred_check
      _
    $region7: #{chomp1d.1} parent=1 // pred_check_branch
      %20 = sbr.rel (0) target = $region9
    $region8: #{chomp1d.1} parent=1 // pred_region
      %22 = dma.done [#allocation3], 128
    $region9: #{chomp1d.1} parent=1 // pred_fallthru
      _
    %v23 = vld [vmem:[#allocation2] sm:$0xff]
    %vm24 = vcmask 113664
    %25 = vst.msk [vmem:[#allocation5] sm:$0xff] %vm24, %v23
    // Predicated region
    $region10: #{chomp1d.1} parent=1 // pred_check
      _
    $region11: #{chomp1d.1} parent=1 // pred_check_branch
      %27 = sbr.rel (0) target = $region13
    $region12: #{chomp1d.1} parent=1 // pred_region
      %29 = vsyncadd [#allocation4], 0
      %s31 = sshll.u32 [#allocation5], 4
      %s32 = int_to_ptr.vmem [resolvable:$true] %s31
      %s33 = sshll.u32 %s1, 4
      %s34 = int_to_ptr.hbm [resolvable:$true] %s33
      %36 = dma.vmem_to_hbm [thread:$0]  %s32, 128, %s34, [#allocation4]
    $region13: #{chomp1d.1} parent=1 // pred_fallthru
      _
    // Predicated region
    $region14: #{chomp1d.1} parent=1 // pred_check
      _
    $region15: #{chomp1d.1} parent=1 // pred_check_branch
      %38 = sbr.rel (0) target = $region17
    $region16: #{chomp1d.1} parent=1 // pred_region
      %40 = dma.done [#allocation4], 128
    $region17: #{chomp1d.1} parent=1 // pred_fallthru
      _
    %41 = vsyncpa [#allocation3], 1
    %42 = vsyncpa [#allocation4], 1

</llo_original>
